<compile_context>
chip_gen: v5e
topology: v5e:2x2
jax: 0.10.0
libtpu: 0.0.40
codegen_flags: <defaults>
</compile_context>

<pallas_src>
import jax
import jax.numpy as jnp
from jax.experimental import pallas as pl
from jax.experimental.pallas import tpu as pltpu


def _mlp_kernel(s_ref, a_ref, w1s_ref, w1a_ref, b1_ref, w2_ref, b2_ref,
                w3_ref, b3_ref, o_ref):
    """One batch tile of out = tanh(tanh([s,a]@W1 + b1)@W2 + b2) @ w3 + b3."""
    s = s_ref[...]
    a = a_ref[...]

    # Layer 1 — fused concat: [s, a] @ W1 == s @ W1[:Ds] + a @ W1[Ds:]
    z1 = (jnp.dot(s, w1s_ref[...], preferred_element_type=jnp.float32)
          + jnp.dot(a, w1a_ref[...], preferred_element_type=jnp.float32)
          + b1_ref[...])
    h1 = jnp.tanh(z1)

    # Layer 2
    z2 = (jnp.dot(h1.astype(w2_ref.dtype), w2_ref[...],
                  preferred_element_type=jnp.float32)
          + b2_ref[...])
    h2 = jnp.tanh(z2)

    # Layer 3 (output dim 1): keep it off the MXU — elementwise multiply (VALU)
    # + lane reduction (XLU), then emit a lane-dense (1, tile) row so the store
    # is a full-width vst instead of a masked 1-lane store.
    red = jnp.sum(h2 * w3_ref[...], axis=-1, keepdims=True)     # (tile, 1)
    o_ref[...] = (red.T + b3_ref[...]).astype(o_ref.dtype)      # (1, tile)


def _round_up(x, m):
    return (x + m - 1) // m * m


def state_action_function_forward(states, actions, params, *, batch_tile=512,
                                  matmul_dtype=None):
    """states: (B, Ds), actions: (B, Da) -> (B, 1) float32.

    params = (w1, b1, w2, b2, w3, b3); weights stored as (in, out) so the kernel
    computes x @ W + b (equivalent to torch Linear's x @ W.T + b).
    matmul_dtype: optionally jnp.bfloat16 to run the two hidden matmuls on the
    bf16 MXU path (v6e/v7x); accumulation stays float32.
    """
    w1, b1, w2, b2, w3, b3 = params
    B, ds = states.shape
    ba, da = actions.shape
    assert B == ba, "states/actions batch mismatch"
    n_h1 = w1.shape[1]
    n_h2 = w2.shape[1]
    assert w1.shape[0] == ds + da and w2.shape[0] == n_h1
    assert w3.shape == (n_h2, 1)

    # --- tile selection ------------------------------------------------------
    # Large tiles amortize the ~0.35us/step grid overhead and fill the MXU M dim.
    # Keep >= 2 grid steps when the batch allows so both v7x TensorCores get work
    # (grid axis is marked "parallel"). VMEM is never the limiter at these sizes.
    max_tile = max(128, (batch_tile // 128) * 128)
    if B <= 128:
        tile = _round_up(B, 8)                      # tiny batch: single step
    else:
        tile = min(max_tile, max(128, (((B + 1) // 2) // 128) * 128))
    b_pad = _round_up(B, tile)
    grid = (b_pad // tile,)

    if b_pad != B:                                   # pad ragged batches (tail tile)
        pad = b_pad - B
        states = jnp.pad(states, ((0, pad), (0, 0)))
        actions = jnp.pad(actions, ((0, pad), (0, 0)))

    # --- parameter prep ------------------------------------------------------
    w1s, w1a = w1[:ds], w1[ds:]                      # fused-concat split
    w3_row = w3.reshape(1, n_h2)                     # used on the VPU, stays f32
    b1 = b1.reshape(1, n_h1)
    b2 = b2.reshape(1, n_h2)
    b3 = b3.reshape(1, 1)

    if matmul_dtype is not None:                     # e.g. bf16 on v6e / v7x
        states = states.astype(matmul_dtype)
        actions = actions.astype(matmul_dtype)
        w1s = w1s.astype(matmul_dtype)
        w1a = w1a.astype(matmul_dtype)
        w2 = w2.astype(matmul_dtype)

    # Grid-invariant blocks: constant index_map means the pipeline never
    # re-issues their DMAs across steps.
    full = lambda arr: pl.BlockSpec(arr.shape, lambda i: (0,) * arr.ndim)

    out = pl.pallas_call(
        _mlp_kernel,
        out_shape=jax.ShapeDtypeStruct((1, b_pad), jnp.float32),
        grid_spec=pltpu.PrefetchScalarGridSpec(
            num_scalar_prefetch=0,
            grid=grid,
            in_specs=[
                pl.BlockSpec((tile, ds), lambda i: (i, 0)),   # states tile
                pl.BlockSpec((tile, da), lambda i: (i, 0)),   # actions tile
                full(w1s), full(w1a), full(b1),
                full(w2), full(b2),
                full(w3_row), full(b3),
            ],
            # Lane-dense output: one (1, tile) row block per grid step.
            out_specs=pl.BlockSpec((1, tile), lambda i: (0, i)),
        ),
        compiler_params=pltpu.CompilerParams(
            dimension_semantics=("parallel",),
        ),
    )(states, actions, w1s, w1a, b1, w2, b2, w3_row, b3)

    return out.reshape(b_pad, 1)[:B]


def init_params(key, state_dim, action_dim, hidden_units=(100, 100)):
    """Mimics torch.nn.Linear default init: U(+-1/sqrt(fan_in)) for W and b."""
    dims = (state_dim + action_dim,) + tuple(hidden_units) + (1,)
    params = []
    for i in range(len(dims) - 1):
        fan_in, fan_out = dims[i], dims[i + 1]
        key, kw, kb = jax.random.split(key, 3)
        bound = 1.0 / jnp.sqrt(fan_in)
        w = jax.random.uniform(kw, (fan_in, fan_out), jnp.float32, -bound, bound)
        b = jax.random.uniform(kb, (1, fan_out), jnp.float32, -bound, bound)
        params += [w, b]
    return tuple(params)


def reference_forward(states, actions, params):
    w1, b1, w2, b2, w3, b3 = params
    x = jnp.concatenate([states, actions], axis=-1)
    h1 = jnp.tanh(x @ w1 + b1.reshape(1, -1))
    h2 = jnp.tanh(h1 @ w2 + b2.reshape(1, -1))
    return h2 @ w3 + b3.reshape(1, 1)


if __name__ == "__main__":
    key = jax.random.PRNGKey(0)
    k_params, k_data = jax.random.split(key)

    state_dim, action_dim = 11, 3
    hidden_units = (100, 100)
    params = init_params(k_params, state_dim, action_dim, hidden_units)

    k_s1, k_a1, k_s2, k_a2 = jax.random.split(k_data, 4)
    cases = [
        (10, k_s1, k_a1),    # tiny batch: single grid step + tail padding path
        (256, k_s2, k_a2),   # tiled path: tile=128, grid=(2,) (both v7x cores busy)
    ]

    for batch, ks, ka in cases:
        states = jax.random.normal(ks, (batch, state_dim), jnp.float32)
        actions = jax.random.normal(ka, (batch, action_dim), jnp.float32)

        out = state_action_function_forward(states, actions, params)
        out = jax.block_until_ready(out)
        ref = reference_forward(states, actions, params)

        assert out.shape == (batch, 1), out.shape
        max_err = jnp.max(jnp.abs(out - ref))
        assert jnp.allclose(out, ref, atol=1e-4, rtol=1e-4), (
            f"batch={batch} max err {max_err}"
        )

    print("KERNEL_OK")
</pallas_src>

<mosaic_0001>
module attributes {stable_mosaic.version = 11 : i64} {
  func.func @_mlp_kernel(%arg0: i32, %arg1: memref<16x11xf32, #tpu.memory_space<vmem>>, %arg2: memref<16x3xf32, #tpu.memory_space<vmem>>, %arg3: memref<11x100xf32, #tpu.memory_space<vmem>>, %arg4: memref<3x100xf32, #tpu.memory_space<vmem>>, %arg5: memref<1x100xf32, #tpu.memory_space<vmem>>, %arg6: memref<100x100xf32, #tpu.memory_space<vmem>>, %arg7: memref<1x100xf32, #tpu.memory_space<vmem>>, %arg8: memref<1x100xf32, #tpu.memory_space<vmem>>, %arg9: memref<1x1xf32, #tpu.memory_space<vmem>>, %arg10: memref<1x16xf32, #tpu.memory_space<vmem>>) attributes {dimension_semantics = [#tpu.dimension_semantics<parallel>], iteration_bounds = array<i64: 1>, scalar_prefetch = 0 : i64, scratch_operands = 0 : i64, tpu.core_type = #tpu.core_type<tc>, window_params = [{transform_indices = @transform_0, window_bounds = array<i64: 16, 11>}, {transform_indices = @transform_1, window_bounds = array<i64: 16, 3>}, {pipeline_mode = #tpu.pipeline_mode<synchronous>, transform_indices = @transform_2, window_bounds = array<i64: 11, 100>}, {pipeline_mode = #tpu.pipeline_mode<synchronous>, transform_indices = @transform_3, window_bounds = array<i64: 3, 100>}, {pipeline_mode = #tpu.pipeline_mode<synchronous>, transform_indices = @transform_4, window_bounds = array<i64: 1, 100>}, {pipeline_mode = #tpu.pipeline_mode<synchronous>, transform_indices = @transform_5, window_bounds = array<i64: 100, 100>}, {pipeline_mode = #tpu.pipeline_mode<synchronous>, transform_indices = @transform_6, window_bounds = array<i64: 1, 100>}, {pipeline_mode = #tpu.pipeline_mode<synchronous>, transform_indices = @transform_7, window_bounds = array<i64: 1, 100>}, {pipeline_mode = #tpu.pipeline_mode<synchronous>, transform_indices = @transform_8, window_bounds = array<i64: 1, 1>}, {transform_indices = @transform_9, window_bounds = array<i64: 1, 16>}]} {
    %c0 = arith.constant 0 : index
    %c0_0 = arith.constant 0 : index
    %0 = vector.load %arg1[%c0, %c0_0] : memref<16x11xf32, #tpu.memory_space<vmem>>, vector<16x11xf32>
    %c0_1 = arith.constant 0 : index
    %c0_2 = arith.constant 0 : index
    %1 = vector.load %arg2[%c0_1, %c0_2] : memref<16x3xf32, #tpu.memory_space<vmem>>, vector<16x3xf32>
    %c0_3 = arith.constant 0 : index
    %c0_4 = arith.constant 0 : index
    %2 = vector.load %arg3[%c0_3, %c0_4] : memref<11x100xf32, #tpu.memory_space<vmem>>, vector<11x100xf32>
    %cst = arith.constant dense<0.000000e+00> : vector<16x100xf32>
    %3 = tpu.matmul %0, %2, %cst {dimension_numbers = #tpu.dot_dimension_numbers<[1], [0], [0], [1], [0, 0, 1, 1], [], []>} : vector<16x11xf32>, vector<11x100xf32>, vector<16x100xf32> -> vector<16x100xf32>
    %c0_5 = arith.constant 0 : index
    %c0_6 = arith.constant 0 : index
    %4 = vector.load %arg4[%c0_5, %c0_6] : memref<3x100xf32, #tpu.memory_space<vmem>>, vector<3x100xf32>
    %cst_7 = arith.constant dense<0.000000e+00> : vector<16x100xf32>
    %5 = tpu.matmul %1, %4, %cst_7 {dimension_numbers = #tpu.dot_dimension_numbers<[1], [0], [0], [1], [0, 0, 1, 1], [], []>} : vector<16x3xf32>, vector<3x100xf32>, vector<16x100xf32> -> vector<16x100xf32>
    %6 = arith.addf %3, %5 : vector<16x100xf32>
    %c0_8 = arith.constant 0 : index
    %c0_9 = arith.constant 0 : index
    %7 = vector.load %arg5[%c0_8, %c0_9] : memref<1x100xf32, #tpu.memory_space<vmem>>, vector<1x100xf32>
    %8 = vector.broadcast %7 : vector<1x100xf32> to vector<16x100xf32>
    %9 = arith.addf %6, %8 : vector<16x100xf32>
    %10 = math.tanh %9 : vector<16x100xf32>
    %c0_10 = arith.constant 0 : index
    %c0_11 = arith.constant 0 : index
    %11 = vector.load %arg6[%c0_10, %c0_11] : memref<100x100xf32, #tpu.memory_space<vmem>>, vector<100x100xf32>
    %cst_12 = arith.constant dense<0.000000e+00> : vector<16x100xf32>
    %12 = tpu.matmul %10, %11, %cst_12 {dimension_numbers = #tpu.dot_dimension_numbers<[1], [0], [0], [1], [0, 0, 1, 1], [], []>} : vector<16x100xf32>, vector<100x100xf32>, vector<16x100xf32> -> vector<16x100xf32>
    %c0_13 = arith.constant 0 : index
    %c0_14 = arith.constant 0 : index
    %13 = vector.load %arg7[%c0_13, %c0_14] : memref<1x100xf32, #tpu.memory_space<vmem>>, vector<1x100xf32>
    %14 = vector.broadcast %13 : vector<1x100xf32> to vector<16x100xf32>
    %15 = arith.addf %12, %14 : vector<16x100xf32>
    %16 = math.tanh %15 : vector<16x100xf32>
    %c0_15 = arith.constant 0 : index
    %c0_16 = arith.constant 0 : index
    %17 = vector.load %arg8[%c0_15, %c0_16] : memref<1x100xf32, #tpu.memory_space<vmem>>, vector<1x100xf32>
    %18 = vector.broadcast %17 : vector<1x100xf32> to vector<16x100xf32>
    %19 = arith.mulf %16, %18 : vector<16x100xf32>
    %cst_17 = arith.constant dense<0.000000e+00> : vector<16xf32>
    %20 = vector.multi_reduction <add>, %19, %cst_17 [1] : vector<16x100xf32> to vector<16xf32>
    %21 = vector.shape_cast %20 : vector<16xf32> to vector<16x1xf32>
    %22 = tpu.transpose %21, [1, 0] : vector<16x1xf32> -> vector<1x16xf32>
    %c0_18 = arith.constant 0 : index
    %c0_19 = arith.constant 0 : index
    %23 = vector.load %arg9[%c0_18, %c0_19] : memref<1x1xf32, #tpu.memory_space<vmem>>, vector<1x1xf32>
    %24 = vector.broadcast %23 : vector<1x1xf32> to vector<1x16xf32>
    %25 = arith.addf %22, %24 : vector<1x16xf32>
    %c0_20 = arith.constant 0 : index
    %c0_21 = arith.constant 0 : index
    %26 = vector.load %arg10[%c0_20, %c0_21] : memref<1x16xf32, #tpu.memory_space<vmem>>, vector<1x16xf32>
    tpu.vector_store %arg10[%c0_20, %c0_21], %25 {strides = array<i32>} : memref<1x16xf32, #tpu.memory_space<vmem>>, vector<1x16xf32>,
    return
  }
  func.func @transform_0(%arg0: i32) -> (i32, i32) {
    %c0_i32 = arith.constant 0 : i32
    %c0_i32_0 = arith.constant 0 : i32
    return %arg0, %c0_i32 : i32, i32
  }
  func.func @transform_1(%arg0: i32) -> (i32, i32) {
    %c0_i32 = arith.constant 0 : i32
    %c0_i32_0 = arith.constant 0 : i32
    return %arg0, %c0_i32 : i32, i32
  }
  func.func @transform_2(%arg0: i32) -> (i32, i32) {
    %c0_i32 = arith.constant 0 : i32
    %c0_i32_0 = arith.constant 0 : i32
    %c0_i32_1 = arith.constant 0 : i32
    return %c0_i32, %c0_i32_0 : i32, i32
  }
  func.func @transform_3(%arg0: i32) -> (i32, i32) {
    %c0_i32 = arith.constant 0 : i32
    %c0_i32_0 = arith.constant 0 : i32
    %c0_i32_1 = arith.constant 0 : i32
    return %c0_i32, %c0_i32_0 : i32, i32
  }
  func.func @transform_4(%arg0: i32) -> (i32, i32) {
    %c0_i32 = arith.constant 0 : i32
    %c0_i32_0 = arith.constant 0 : i32
    %c0_i32_1 = arith.constant 0 : i32
    return %c0_i32, %c0_i32_0 : i32, i32
  }
  func.func @transform_5(%arg0: i32) -> (i32, i32) {
    %c0_i32 = arith.constant 0 : i32
    %c0_i32_0 = arith.constant 0 : i32
    %c0_i32_1 = arith.constant 0 : i32
    return %c0_i32, %c0_i32_0 : i32, i32
  }
  func.func @transform_6(%arg0: i32) -> (i32, i32) {
    %c0_i32 = arith.constant 0 : i32
    %c0_i32_0 = arith.constant 0 : i32
    %c0_i32_1 = arith.constant 0 : i32
    return %c0_i32, %c0_i32_0 : i32, i32
  }
  func.func @transform_7(%arg0: i32) -> (i32, i32) {
    %c0_i32 = arith.constant 0 : i32
    %c0_i32_0 = arith.constant 0 : i32
    %c0_i32_1 = arith.constant 0 : i32
    return %c0_i32, %c0_i32_0 : i32, i32
  }
  func.func @transform_8(%arg0: i32) -> (i32, i32) {
    %c0_i32 = arith.constant 0 : i32
    %c0_i32_0 = arith.constant 0 : i32
    %c0_i32_1 = arith.constant 0 : i32
    return %c0_i32, %c0_i32_0 : i32, i32
  }
  func.func @transform_9(%arg0: i32) -> (i32, i32) {
    %c0_i32 = arith.constant 0 : i32
    %c0_i32_0 = arith.constant 0 : i32
    return %c0_i32, %arg0 : i32, i32
  }
}

</mosaic_0001>

<llo_original>
// kernel: tpu_custom_call.1
$region0: #{tpu_custom_call.1}
  #allocation0 [shape = 'u32[]', space=smem, size = 0x4, offset = 0x4, fixed_abs, tag = 'smem constant byte address 0x4 - core index']
  #allocation1 [shape = 'u32[72,128]{1,0:T(1,128)}', space=vmem, size = 0x9000, scoped, tag = 'internal scratch']
  #allocation2 [shape = 'f32[1,1]{1,0:T(1,128)S(1)}', space=vmem, size = 0x200, scoped, tag = 'scoped memory for tpu_custom_call.1']
  %s0 = inlined_call_operand.vmem [shape: f32[16,11], index: 0, kind: input, shape index: {}]
  %s1 = inlined_call_operand.vmem [shape: f32[16,3], index: 1, kind: input, shape index: {}]
  %s2 = inlined_call_operand.hbm [shape: f32[11,100], index: 2, kind: input, shape index: {}]
  %s3 = inlined_call_operand.vmem [shape: f32[3,100], index: 3, kind: input, shape index: {}]
  %s4 = inlined_call_operand.vmem [shape: f32[1,100], index: 4, kind: input, shape index: {}]
  %s5 = inlined_call_operand.hbm [shape: f32[100,100], index: 5, kind: input, shape index: {}]
  %s6 = inlined_call_operand.vmem [shape: f32[1,100], index: 6, kind: input, shape index: {}]
  %s7 = inlined_call_operand.vmem [shape: f32[1,100], index: 7, kind: input, shape index: {}]
  %s8 = inlined_call_operand.<no memory space> [shape: f32[1,1], index: 8, kind: input, shape index: {}]
  %s9 = inlined_call_operand.hbm [shape: f32[1,16], index: 9, kind: output, shape index: {}]
  %s10 = sld [smem:[#allocation0]]
  $region54: #{tpu_custom_call.1} parent=0
    _
  %s12 = ssub.s32 1, %s10
  %s13 = scalar_select 0, %s12, %s10
  %v14 = vstv %s8
  %15 = vst [vmem:[#allocation2] sm:$0x1] %v14
  $region1: #{tpu_custom_call.1} parent=0
    #allocation3 [shape = 'u8[8192]{0}', space=vmem, size = 0x2000, scoped, tag = 'input window, operand 2, single buffered']
    #allocation4 [shape = 's32[1]{0}', space=sflag, size = 0x4, scoped, tag = 'scoped memory for tpu_custom_call.1']
    #allocation5 [shape = 's32[1]{0}', space=sflag, size = 0x4, scoped, tag = 'scoped memory for tpu_custom_call.1']
    #allocation6 [shape = 'u8[53248]{0}', space=vmem, size = 0xd000, scoped, tag = 'input window, operand 5, single buffered']
    #allocation7 [shape = 's32[1]{0}', space=sflag, size = 0x4, scoped, tag = 'scoped memory for tpu_custom_call.1']
    #allocation8 [shape = 'u8[512]{0}', space=vmem, size = 0x400, scoped, tag = 'output window, operand 0, single buffered']
    %16 = vsyncpa [#allocation4], 0
    %17 = vsyncpa [#allocation7], 0
    %18 = vsyncpa [#allocation5], 0
    // Predicated region
    $region2: #{tpu_custom_call.1} parent=1 // pred_check
      _
    $region3: #{tpu_custom_call.1} parent=1 // pred_check_branch
      %20 = sbr.rel (0) target = $region5
    $region4: #{tpu_custom_call.1} parent=1 // pred_region
      _
    $region5: #{tpu_custom_call.1} parent=1 // pred_fallthru
      _
    // Predicated region
    $region6: #{tpu_custom_call.1} parent=1 // pred_check
      _
    $region7: #{tpu_custom_call.1} parent=1 // pred_check_branch
      %22 = sbr.rel (0) target = $region9
    $region8: #{tpu_custom_call.1} parent=1 // pred_region
      _
    $region9: #{tpu_custom_call.1} parent=1 // pred_fallthru
      _
    // Predicated region
    $region10: #{tpu_custom_call.1} parent=1 // pred_check
      _
    $region11: #{tpu_custom_call.1} parent=1 // pred_check_branch
      %24 = sbr.rel (0) target = $region13
    $region12: #{tpu_custom_call.1} parent=1 // pred_region
      %26 = vsyncadd [#allocation4], 0
      %s27 = sshll.u32 %s2, 4
      %s28 = int_to_ptr.hbm [resolvable:$true] %s27
      %s29 = sshll.u32 [#allocation3], 4
      %s30 = int_to_ptr.vmem [resolvable:$true] %s29
      %35 = dma.hbm_to_vmem [thread:$0]  %s28, 256, %s30, [#allocation4], 128, 128, 8
    $region13: #{tpu_custom_call.1} parent=1 // pred_fallthru
      _
    // Predicated region
    $region14: #{tpu_custom_call.1} parent=1 // pred_check
      _
    $region15: #{tpu_custom_call.1} parent=1 // pred_check_branch
      %37 = sbr.rel (0) target = $region17
    $region16: #{tpu_custom_call.1} parent=1 // pred_region
      _
    $region17: #{tpu_custom_call.1} parent=1 // pred_fallthru
      _
    // Predicated region
    $region18: #{tpu_custom_call.1} parent=1 // pred_check
      _
    $region19: #{tpu_custom_call.1} parent=1 // pred_check_branch
      %39 = sbr.rel (0) target = $region21
    $region20: #{tpu_custom_call.1} parent=1 // pred_region
      _
    $region21: #{tpu_custom_call.1} parent=1 // pred_fallthru
      _
    // Predicated region
    $region22: #{tpu_custom_call.1} parent=1 // pred_check
      _
    $region23: #{tpu_custom_call.1} parent=1 // pred_check_branch
      %41 = sbr.rel (0) target = $region25
    $region24: #{tpu_custom_call.1} parent=1 // pred_region
      %43 = vsyncadd [#allocation7], 0
      %s44 = sshll.u32 %s5, 4
      %s45 = int_to_ptr.hbm [resolvable:$true] %s44
      %s46 = sshll.u32 [#allocation6], 4
      %s47 = int_to_ptr.vmem [resolvable:$true] %s46
      %52 = dma.hbm_to_vmem [thread:$0]  %s45, 1664, %s47, [#allocation7], 128, 128, 8
    $region25: #{tpu_custom_call.1} parent=1 // pred_fallthru
      _
    // Predicated region
    $region26: #{tpu_custom_call.1} parent=1 // pred_check
      _
    $region27: #{tpu_custom_call.1} parent=1 // pred_check_branch
      %54 = sbr.rel (0) target = $region29
    $region28: #{tpu_custom_call.1} parent=1 // pred_region
      _
    $region29: #{tpu_custom_call.1} parent=1 // pred_fallthru
      _
    // Predicated region
    $region30: #{tpu_custom_call.1} parent=1 // pred_check
      _
    $region31: #{tpu_custom_call.1} parent=1 // pred_check_branch
      %56 = sbr.rel (0) target = $region33
    $region32: #{tpu_custom_call.1} parent=1 // pred_region
      _
    $region33: #{tpu_custom_call.1} parent=1 // pred_fallthru
      _
    // Predicated region
    $region34: #{tpu_custom_call.1} parent=1 // pred_check
      _
    $region35: #{tpu_custom_call.1} parent=1 // pred_check_branch
      %58 = sbr.rel (0) target = $region37
    $region36: #{tpu_custom_call.1} parent=1 // pred_region
      _
    $region37: #{tpu_custom_call.1} parent=1 // pred_fallthru
      _
    // Predicated region
    $region38: #{tpu_custom_call.1} parent=1 // pred_check
      _
    $region39: #{tpu_custom_call.1} parent=1 // pred_check_branch
      %60 = sbr.rel (0) target = $region41
    $region40: #{tpu_custom_call.1} parent=1 // pred_region
      %62 = dma.done [#allocation4], 256
    $region41: #{tpu_custom_call.1} parent=1 // pred_fallthru
      _
    // Predicated region
    $region42: #{tpu_custom_call.1} parent=1 // pred_check
      _
    $region43: #{tpu_custom_call.1} parent=1 // pred_check_branch
      %64 = sbr.rel (0) target = $region45
    $region44: #{tpu_custom_call.1} parent=1 // pred_region
      %66 = dma.done [#allocation7], 1664
    $region45: #{tpu_custom_call.1} parent=1 // pred_fallthru
      _
    %v67 = vld [vmem:[%s0] sm:$0xff]
    %v68 = vld [vmem:[%s0 + $0x8] sm:$0xff]
    %v69 = vld [vmem:[%s1] sm:$0xff]
    %v70 = vld [vmem:[%s1 + $0x8] sm:$0xff]
    %v71 = vld [vmem:[#allocation3] sm:$0xff]
    %v72 = vld [vmem:[#allocation3 + $0x8] sm:$0x7]
    %v73 = vld [vmem:[%s3] sm:$0x7]
    %vm74 = vcmask 23552
    %v76 = vsel %vm74, %v69, 0
    %v79 = vsel %vm74, %v70, 0
    %vm81 = vcmask 1042432
    %v83 = vsel %vm81, %v73, 0
    %85 = vmatpush.msra.mxu0 0.0
    %86 = vmatpush.msra.mxu0 0.0
    %87 = vmatpush.msra.mxu0 0.0
    %88 = vmatpush.msra.mxu0 0.0
    %89 = vmatpush.msra.mxu0 0.0
    %90 = vmatpush.msra.mxu0 0.0
    %91 = vmatpush.msra.mxu0 0.0
    %92 = vmatpush.msra.mxu0 0.0
    %93 = vmatpush.msra.mxu0 0.0
    %94 = vmatpush.msra.mxu0 0.0
    %95 = vmatpush.msra.mxu0 0.0
    %96 = vmatpush.msra.mxu0 0.0
    %97 = vmatpush.msra.mxu0 0.0
    %98 = vmatpush.msra.mxu0 0.0
    %99 = vmatpush.msra.mxu0 0.0
    %100 = vmatpush.msra.mxu0 %v83
    %101 = vmatmul.f32.gmra.mxu0 %v76
    %v102 = vpop.f32.mrf.mxu0
    %v103 = vadd.f32 0.0, %v102
    %104 = vmatmul.f32.gmra.mxu0 %v79
    %v105 = vpop.f32.mrf.mxu0
    %v106 = vadd.f32 0.0, %v105
    %107 = vdwg.mxu0
    %vm108 = vcmask 89088
    %v110 = vsel %vm108, %v67, 0
    %v113 = vsel %vm108, %v68, 0
    %v116 = vsel %vm81, %v72, 0
    %118 = vmatpush.msra.mxu0 0.0
    %119 = vmatpush.msra.mxu0 0.0
    %120 = vmatpush.msra.mxu0 0.0
    %121 = vmatpush.msra.mxu0 0.0
    %122 = vmatpush.msra.mxu0 0.0
    %123 = vmatpush.msra.mxu0 0.0
    %124 = vmatpush.msra.mxu0 0.0
    %125 = vmatpush.msra.mxu0 0.0
    %126 = vmatpush.msra.mxu0 0.0
    %127 = vmatpush.msra.mxu0 0.0
    %128 = vmatpush.msra.mxu0 0.0
    %129 = vmatpush.msra.mxu0 0.0
    %130 = vmatpush.msra.mxu0 0.0
    %131 = vmatpush.msra.mxu0 0.0
    %132 = vmatpush.msra.mxu0 %v116
    %133 = vmatpush.msra.mxu0 %v71
    %134 = vmatmul.f32.gmra.mxu0 %v110
    %v135 = vpop.f32.mrf.mxu0
    %v136 = vadd.f32 %v103, %v135
    %137 = vmatmul.f32.gmra.mxu0 %v113
    %v138 = vpop.f32.mrf.mxu0
    %v139 = vadd.f32 %v106, %v138
    %140 = vdwg.mxu0
    %v141 = vld [vmem:[%s4] sm:$0x1]
    %v143 = vperm.slane %v141, 0
    %v145 = vadd.f32 %v136, %v143
    %v146 = vadd.f32 %v139, %v143
    %v147 = vtanh.pop %v145
    %v148 = vtanh.pop %v146
    %v149 = vld [vmem:[#allocation6] sm:$0xff]
    %v150 = vld [vmem:[#allocation6 + $0x8] sm:$0xff]
    %v151 = vld [vmem:[#allocation6 + $0x10] sm:$0xff]
    %v152 = vld [vmem:[#allocation6 + $0x18] sm:$0xff]
    %v153 = vld [vmem:[#allocation6 + $0x20] sm:$0xff]
    %v154 = vld [vmem:[#allocation6 + $0x28] sm:$0xff]
    %v155 = vld [vmem:[#allocation6 + $0x30] sm:$0xff]
    %v156 = vld [vmem:[#allocation6 + $0x38] sm:$0xff]
    %v157 = vld [vmem:[#allocation6 + $0x40] sm:$0xff]
    %v158 = vld [vmem:[#allocation6 + $0x48] sm:$0xff]
    %v159 = vld [vmem:[#allocation6 + $0x50] sm:$0xff]
    %v160 = vld [vmem:[#allocation6 + $0x58] sm:$0xff]
    %v161 = vld [vmem:[#allocation6 + $0x60] sm:$0xf]
    %v162 = vld [vmem:[%s6] sm:$0x1]
    %v164 = vperm.slane %v162, 0
    %vm166 = vcmask 818176
    %v168 = vsel %vm166, %v147, 0
    %v171 = vsel %vm166, %v148, 0
    %vm173 = vcmask 1043456
    %v175 = vsel %vm173, %v161, 0
    %177 = vmatpush.msra.mxu0 0.0
    %178 = vmatpush.msra.mxu0 0.0
    %179 = vmatpush.msra.mxu0 0.0
    %180 = vmatpush.msra.mxu0 %v175
    %181 = vmatpush.msra.mxu0 %v160
    %182 = vmatpush.msra.mxu0 %v159
    %183 = vmatpush.msra.mxu0 %v158
    %184 = vmatpush.msra.mxu0 %v157
    %185 = vmatpush.msra.mxu0 %v156
    %186 = vmatpush.msra.mxu0 %v155
    %187 = vmatpush.msra.mxu0 %v154
    %188 = vmatpush.msra.mxu0 %v153
    %189 = vmatpush.msra.mxu0 %v152
    %190 = vmatpush.msra.mxu0 %v151
    %191 = vmatpush.msra.mxu0 %v150
    %192 = vmatpush.msra.mxu0 %v149
    %193 = vmatmul.f32.gmra.mxu0 %v168
    %v194 = vpop.f32.mrf.mxu0
    %v195 = vadd.f32 %v164, %v194
    %196 = vmatmul.f32.gmra.mxu0 %v171
    %v197 = vpop.f32.mrf.mxu0
    %v198 = vadd.f32 %v164, %v197
    %199 = vdwg.mxu0
    %v200 = vtanh.pop %v195
    %v201 = vtanh.pop %v198
    %v202 = vld [vmem:[%s7] sm:$0x1]
    %v204 = vperm.slane %v202, 0
    %v206 = vmul.f32 %v200, %v204
    %v207 = vmul.f32 %v201, %v204
    %v208 = vsel %vm166, %v206, 0.0
    %209 = vadd.xlane.f32.xlu0 %v208
    %v210 = vpop.xlane.xlu0 %209
    %v211 = vsel %vm166, %v207, 0.0
    %212 = vadd.xlane.f32.xlu0 %v211
    %v213 = vpop.xlane.xlu0 %212
    %214 = vxpose.xlu0.b32.start [1/16] %v210, 128
    %215 = vxpose.xlu0.b32.cont [2/16] %v213, 128
    %216 = vxpose.xlu0.b32.cont [3/16] 0.0, 128
    %217 = vxpose.xlu0.b32.cont [4/16] 0.0, 128
    %218 = vxpose.xlu0.b32.cont [5/16] 0.0, 128
    %219 = vxpose.xlu0.b32.cont [6/16] 0.0, 128
    %220 = vxpose.xlu0.b32.cont [7/16] 0.0, 128
    %221 = vxpose.xlu0.b32.cont [8/16] 0.0, 128
    %222 = vxpose.xlu0.b32.cont [9/16] 0.0, 128
    %223 = vxpose.xlu0.b32.cont [10/16] 0.0, 128
    %224 = vxpose.xlu0.b32.cont [11/16] 0.0, 128
    %225 = vxpose.xlu0.b32.cont [12/16] 0.0, 128
    %226 = vxpose.xlu0.b32.cont [13/16] 0.0, 128
    %227 = vxpose.xlu0.b32.cont [14/16] 0.0, 128
    %228 = vxpose.xlu0.b32.cont [15/16] 0.0, 128
    %229 = vxpose.xlu0.b32.end [16/16] 0.0, 128
    %v230 = vpop.trf.xlu0
    %v231 = vpop.trf.xlu0
    %v232 = vpop.trf.xlu0
    %v233 = vpop.trf.xlu0
    %v234 = vpop.trf.xlu0
    %v235 = vpop.trf.xlu0
    %v236 = vpop.trf.xlu0
    %v237 = vpop.trf.xlu0
    %v238 = vpop.trf.xlu0
    %v239 = vpop.trf.xlu0
    %v240 = vpop.trf.xlu0
    %v241 = vpop.trf.xlu0
    %v242 = vpop.trf.xlu0
    %v243 = vpop.trf.xlu0
    %v244 = vpop.trf.xlu0
    %v245 = vpop.trf.xlu0
    %v246 = vld [vmem:[#allocation2] sm:$0x1]
    %248 = vset.pattern.permute.xlu0 0
    %249 = vperm.xlu0 %248, %v246
    %v250 = vpop.permute.xlu0 %249
    %v252 = vperm.slane %v250, 0
    %v253 = vadd.f32 %v230, %v252
    %vm254 = vcmask 122880
    %255 = vst.msk [vmem:[#allocation8] sm:$0x1] %vm254, %v253
    // Predicated region
    $region46: #{tpu_custom_call.1} parent=1 // pred_check
      _
    $region47: #{tpu_custom_call.1} parent=1 // pred_check_branch
      %257 = sbr.rel (0) target = $region49
    $region48: #{tpu_custom_call.1} parent=1 // pred_region
      %259 = vsyncadd [#allocation5], 0
      %s261 = sshll.u32 [#allocation8], 4
      %s262 = int_to_ptr.vmem [resolvable:$true] %s261
      %s263 = sshll.u32 %s9, 4
      %s264 = int_to_ptr.hbm [resolvable:$true] %s263
      %266 = dma.vmem_to_hbm [thread:$0]  %s262, 16, %s264, [#allocation5]
    $region49: #{tpu_custom_call.1} parent=1 // pred_fallthru
      _
    // Predicated region
    $region50: #{tpu_custom_call.1} parent=1 // pred_check
      _
    $region51: #{tpu_custom_call.1} parent=1 // pred_check_branch
      %268 = sbr.rel (0) target = $region53
    $region52: #{tpu_custom_call.1} parent=1 // pred_region
      %270 = dma.done [#allocation5], 16
    $region53: #{tpu_custom_call.1} parent=1 // pred_fallthru
      _
    %271 = vsyncpa [#allocation4], 1
    %272 = vsyncpa [#allocation7], 1
    %273 = vsyncpa [#allocation5], 1

</llo_original>
